<compile_context>
chip_gen: v7x
topology: tpu7x:2x2x1
jax: 0.10.0
libtpu: 0.0.40
codegen_flags: <defaults>
</compile_context>

<pallas_src>
import functools

import jax
import jax.numpy as jnp
from jax.experimental import pallas as pl
from jax.experimental.pallas import tpu as pltpu


def _round_up(x: int, m: int) -> int:
    return ((x + m - 1) // m) * m


def _l2_normalize(x):
    # Matches F.normalize(p=2, dim=-1, eps=1e-12): x / max(||x||, eps)
    norm = jnp.sqrt(jnp.sum(x * x, axis=-1, keepdims=True))
    return x / jnp.maximum(norm, jnp.float32(1e-12))


def _infonce_pairs_kernel(a_row_ref, p_row_ref, cols_ref, o_ref, *,
                          temp, batch, tile_rows, b_pad, compute_dtype, softmax_dtype):
    i = pl.program_id(0)
    tq = tile_rows
    inv_temp = jnp.float32(1.0 / temp)
    tiny = jnp.float32(jnp.finfo(jnp.float32).tiny)   # c_f.small_val(float32)

    an = a_row_ref[...]                                # (tq, d) f32, pre-normalized in wrapper
    pn = p_row_ref[...]                                # (tq, d) f32, pre-normalized in wrapper

    # Exact f32 positive logit on the VPU (shared by the anchor row and its partner row).
    pos = jnp.sum(an * pn, axis=-1, keepdims=True) * inv_temp          # (tq, 1)

    # ONE fused MXU matmul per tile: rows = [anchor tile; positive tile] with 1/temp folded in,
    # columns = pre-normalized [anchors; positives] already in compute_dtype.
    lhs = jnp.concatenate([an, pn], axis=0)                            # (2*tq, d) f32, aligned
    lhs = (lhs * inv_temp).astype(compute_dtype)
    rhs = cols_ref[...]                                                # (2*b_pad, d)
    dn = (((1,), (1,)), ((), ()))                                      # contract on D (rhs^T)
    s = jax.lax.dot_general(lhs, rhs, dn, preferred_element_type=jnp.float32)  # (2tq, 2bp)

    two_bp = 2 * b_pad
    s_a = s[:tq, :]                                                    # anchor rows  (tq, 2bp)
    s_p = s[tq:, :]                                                    # positive rows (tq, 2bp)

    # Single (tq, 2bp) keep mask reused for both row halves: drop padding columns and the
    # self/partner columns (both live at column == global row index in their half).
    col = jax.lax.broadcasted_iota(jnp.int32, (tq, two_bp), 1)
    row = jax.lax.broadcasted_iota(jnp.int32, (tq, two_bp), 0) + i * tq
    col_m = jnp.where(col >= b_pad, col - b_pad, col)
    keep = jnp.logical_and(col_m < batch, col_m != row)

    # Fixed shift: every logit <= 1/temp (cosine <= 1), so exp(x - 1/temp) in (0, 1] and the
    # minimum exp(-2/temp) is representable -> no per-row max reduction needed.
    def _neg_sum(sim_blk):
        shifted = sim_blk - inv_temp
        if jnp.dtype(softmax_dtype) == jnp.dtype(jnp.float32):
            e = jnp.where(keep, jnp.exp(shifted), 0.0)
            return jnp.sum(e, axis=1, keepdims=True)                   # (tq, 1) f32
        # bf16 exp path (v6e/v7x EUP relief); accumulation stays f32.
        e = jnp.exp(shifted.astype(softmax_dtype))
        e = jnp.where(keep, e, 0.0)
        return jnp.sum(e, axis=1, keepdims=True, dtype=jnp.float32)

    num = jnp.exp(pos - inv_temp)                                      # (tq, 1) f32
    den_a = num + _neg_sum(s_a)
    den_p = num + _neg_sum(s_p)
    # Anchor-row loss + positive-row loss for each pair (exact divide on (tq,1) is negligible).
    loss = -(jnp.log(num / den_a + tiny) + jnp.log(num / den_p + tiny))  # (tq, 1)

    row_valid = (jax.lax.broadcasted_iota(jnp.int32, (tq, 1), 0) + i * tq) < batch
    partial = jnp.sum(jnp.where(row_valid, loss, jnp.float32(0.0)),
                      axis=0, keepdims=True)                           # (1, 1)

    # Lane-dense, unmasked store of this tile's partial sum into its own output block.
    o_ref[...] = jnp.broadcast_to(partial, o_ref.shape)


def _vmem_capacity_bytes() -> int:
    try:
        return int(pltpu.get_tpu_info().vmem_capacity_bytes)
    except Exception:
        return 64 * 1024 * 1024     # conservative per-TensorCore default (v7x)


def _pick_tiling(b, d, compute_dtype, block_rows, vmem_limit_bytes):
    """Pick a sublane-aligned row tile that keeps the per-step working set inside VMEM."""
    cbytes = jnp.dtype(compute_dtype).itemsize
    budget = int(0.8 * vmem_limit_bytes)
    tq = _round_up(min(block_rows, _round_up(b, 8)), 8)
    while True:
        b_pad = _round_up(b, tq)
        cols = 2 * (2 * b_pad) * d * cbytes          # column operand (<= 2 buffers)
        rows = 2 * 2 * 2 * tq * d * 4                # two double-buffered f32 row inputs
        live = 4 * (2 * tq) * (2 * b_pad) * 4        # sim/exp/mask f32 temporaries per step
        if tq <= 8 or cols + rows + live <= budget:
            return tq, b_pad
        tq = max(8, (tq // 2) // 8 * 8)


def info_nce_pairs_loss(anchors, positives, temp: float = 0.05, *,
                        block_rows: int = 256, compute_dtype=jnp.bfloat16,
                        softmax_dtype=jnp.float32, vmem_limit_bytes=None):
    """JAX/Pallas equivalent of InfoNCEPairs(temp).forward(anchors, positives)."""
    assert anchors.shape == positives.shape and anchors.ndim == 2
    b, d = anchors.shape

    if vmem_limit_bytes is None:
        cap = _vmem_capacity_bytes()
        vmem_limit_bytes = max(32 * 1024 * 1024, min(int(cap * 0.85), 112 * 1024 * 1024))
    tq, b_pad = _pick_tiling(b, d, compute_dtype, block_rows, vmem_limit_bytes)
    g = b_pad // tq
    pad = b_pad - b

    # Normalize ONCE in the wrapper (XLA, f32) -- the kernel never normalizes.
    an = _l2_normalize(anchors.astype(jnp.float32))
    pn = _l2_normalize(positives.astype(jnp.float32))
    if pad:
        # Padding happens after normalization, so padded rows/columns are exact zeros.
        an = jnp.pad(an, ((0, pad), (0, 0)))
        pn = jnp.pad(pn, ((0, pad), (0, 0)))
    # Single pre-cast column operand: anchors occupy [0, b_pad), positives [b_pad, 2*b_pad).
    cols = jnp.concatenate([an, pn], axis=0).astype(compute_dtype)     # (2*b_pad, d)

    kernel = functools.partial(
        _infonce_pairs_kernel, temp=float(temp), batch=b, tile_rows=tq, b_pad=b_pad,
        compute_dtype=compute_dtype, softmax_dtype=softmax_dtype)

    out_shape = jax.ShapeDtypeStruct((g * 8, 128), jnp.float32)

    def _call(col_spec):
        return pl.pallas_call(
            kernel,
            out_shape=out_shape,
            grid=(g,),
            in_specs=[
                pl.BlockSpec((tq, d), lambda i: (i, 0)),      # anchor row tile (f32)
                pl.BlockSpec((tq, d), lambda i: (i, 0)),      # positive row tile (f32)
                col_spec,                                     # all columns (compute_dtype)
            ],
            # Per-tile partial sums: independent blocks -> row axis can be "parallel".
            out_specs=pl.BlockSpec((8, 128), lambda i: (i, 0)),
            compiler_params=pltpu.CompilerParams(
                dimension_semantics=("parallel",),
                vmem_limit_bytes=int(vmem_limit_bytes),
            ),
        )(an, pn, cols)

    try:
        # Constant index_map -> a single VMEM buffer for the resident column operand.
        out = _call(pl.BlockSpec((2 * b_pad, d), lambda i: (0, 0),
                                 pipeline_mode=pl.Buffered(1)))
    except Exception:
        out = _call(pl.BlockSpec((2 * b_pad, d), lambda i: (0, 0)))

    # Each tile's partial sum is splatted over its (8,128) block; take one element per tile.
    total = jnp.sum(out[::8, 0])
    return total / jnp.float32(2 * b)                 # MeanReducer over 2B rows


def _reference_loss(anchors, positives, temp: float = 0.05):
    """Pure-JAX f32 reference of NTXentLoss (mirrors the PyTorch module) for sanity checks."""
    emb = jnp.concatenate([anchors, positives], axis=0).astype(jnp.float32)
    n = emb.shape[0]
    half = n // 2
    emb_n = emb / jnp.maximum(jnp.linalg.norm(emb, axis=-1, keepdims=True), 1e-12)
    sim = (emb_n @ emb_n.T) / temp
    labels = jnp.concatenate([jnp.arange(half), jnp.arange(half)])
    same = labels[:, None] == labels[None, :]
    eye = jnp.eye(n, dtype=bool)
    pos = jnp.sum(jnp.where(same & ~eye, sim, 0.0), axis=1, keepdims=True)
    neg = jnp.where(~same, sim, -3.0e38)
    max_val = jnp.maximum(pos, jnp.max(neg, axis=1, keepdims=True))
    num = jnp.exp(pos - max_val)
    den = jnp.sum(jnp.exp(neg - max_val), axis=1, keepdims=True) + num
    return jnp.mean(-jnp.log(num / den + jnp.finfo(jnp.float32).tiny))


if __name__ == "__main__":
    # Small deterministic inputs consistent with forward(): (batch, embedding_dim).
    B, D = 8, 32
    key = jax.random.PRNGKey(0)
    ka, kp = jax.random.split(key)
    anchors = jax.random.normal(ka, (B, D), dtype=jnp.float32)
    positives = jax.random.normal(kp, (B, D), dtype=jnp.float32)

    ref = jax.block_until_ready(_reference_loss(anchors, positives, temp=0.05))

    # Exact-semantics path (f32 MXU, f32 softmax) -> tight tolerance vs. PyTorch-equivalent ref.
    loss_f32 = jax.block_until_ready(
        info_nce_pairs_loss(anchors, positives, temp=0.05, compute_dtype=jnp.float32))
    assert jnp.allclose(loss_f32, ref, rtol=1e-4, atol=1e-4), (loss_f32, ref)

    # Default fast path (bf16 MXU, f32 accumulate + f32 softmax) -> loose tolerance.
    loss_bf16 = jax.block_until_ready(
        info_nce_pairs_loss(anchors, positives, temp=0.05))
    assert jnp.allclose(loss_bf16, ref, rtol=5e-2, atol=5e-2), (loss_bf16, ref)

    # EUP-relief path for v6e/v7x (bf16 exps, f32 accumulation) -> just check it runs clean.
    loss_fast = jax.block_until_ready(
        info_nce_pairs_loss(anchors, positives, temp=0.05, softmax_dtype=jnp.bfloat16))
    assert bool(jnp.isfinite(loss_fast)), loss_fast

    print("KERNEL_OK")
</pallas_src>

<mosaic_0001>
module attributes {stable_mosaic.version = 11 : i64} {
  func.func @_infonce_pairs_kernel(%arg0: i32, %arg1: memref<8x32xf32, #tpu.memory_space<vmem>>, %arg2: memref<8x32xf32, #tpu.memory_space<vmem>>, %arg3: memref<16x32xf32, #tpu.memory_space<vmem>>, %arg4: memref<8x128xf32, #tpu.memory_space<vmem>>) attributes {dimension_semantics = [#tpu.dimension_semantics<parallel>], iteration_bounds = array<i64: 1>, scalar_prefetch = 0 : i64, scratch_operands = 0 : i64, tpu.core_type = #tpu.core_type<tc>, window_params = [{transform_indices = @transform_0, window_bounds = array<i64: 8, 32>}, {transform_indices = @transform_1, window_bounds = array<i64: 8, 32>}, {pipeline_mode = #tpu.pipeline_mode<synchronous>, transform_indices = @transform_2, window_bounds = array<i64: 16, 32>}, {transform_indices = @transform_3, window_bounds = array<i64: 8, 128>}]} {
    %c0 = arith.constant 0 : index
    %c0_0 = arith.constant 0 : index
    %0 = vector.load %arg1[%c0, %c0_0] : memref<8x32xf32, #tpu.memory_space<vmem>>, vector<8x32xf32>
    %c0_1 = arith.constant 0 : index
    %c0_2 = arith.constant 0 : index
    %1 = vector.load %arg2[%c0_1, %c0_2] : memref<8x32xf32, #tpu.memory_space<vmem>>, vector<8x32xf32>
    %2 = arith.mulf %0, %1 : vector<8x32xf32>
    %cst = arith.constant dense<0.000000e+00> : vector<8xf32>
    %3 = vector.multi_reduction <add>, %2, %cst [1] : vector<8x32xf32> to vector<8xf32>
    %4 = vector.shape_cast %3 : vector<8xf32> to vector<8x1xf32>
    %cst_3 = arith.constant 2.000000e+01 : f32
    %5 = vector.broadcast %cst_3 : f32 to vector<8x1xf32>
    %6 = arith.mulf %4, %5 : vector<8x1xf32>
    %7 = tpu.concatenate %0, %1 in 0 : vector<8x32xf32>, vector<8x32xf32> -> vector<16x32xf32>
    %cst_4 = arith.constant 2.000000e+01 : f32
    %8 = vector.broadcast %cst_4 : f32 to vector<16x32xf32>
    %9 = arith.mulf %7, %8 : vector<16x32xf32>
    %c0_5 = arith.constant 0 : index
    %c0_6 = arith.constant 0 : index
    %10 = vector.load %arg3[%c0_5, %c0_6] : memref<16x32xf32, #tpu.memory_space<vmem>>, vector<16x32xf32>
    %cst_7 = arith.constant dense<0.000000e+00> : vector<16x16xf32>
    %11 = tpu.matmul %9, %10, %cst_7 {dimension_numbers = #tpu.dot_dimension_numbers<[1], [1], [0], [0], [0, 0, 1, 0], [], []>} : vector<16x32xf32>, vector<16x32xf32>, vector<16x16xf32> -> vector<16x16xf32>
    %12 = vector.extract_strided_slice %11 {offsets = [0, 0], sizes = [8, 16], strides = [1, 1]} : vector<16x16xf32> to vector<8x16xf32>
    %13 = vector.extract_strided_slice %11 {offsets = [8, 0], sizes = [8, 16], strides = [1, 1]} : vector<16x16xf32> to vector<8x16xf32>
    %14 = tpu.iota {dimensions = array<i32: 1>} : vector<8x16xi32>
    %15 = tpu.iota {dimensions = array<i32: 0>} : vector<8x16xi32>
    %c8_i32 = arith.constant 8 : i32
    %16 = arith.muli %arg0, %c8_i32 : i32
    %17 = vector.broadcast %16 : i32 to vector<8x16xi32>
    %18 = arith.addi %15, %17 : vector<8x16xi32>
    %c8_i32_8 = arith.constant 8 : i32
    %19 = vector.broadcast %c8_i32_8 : i32 to vector<8x16xi32>
    %20 = arith.cmpi sge, %14, %19 : vector<8x16xi32>
    %c8_i32_9 = arith.constant 8 : i32
    %21 = vector.broadcast %c8_i32_9 : i32 to vector<8x16xi32>
    %22 = arith.subi %14, %21 : vector<8x16xi32>
    %23 = arith.select %20, %22, %14 : vector<8x16xi1>, vector<8x16xi32>
    %c8_i32_10 = arith.constant 8 : i32
    %24 = vector.broadcast %c8_i32_10 : i32 to vector<8x16xi32>
    %25 = arith.cmpi slt, %23, %24 : vector<8x16xi32>
    %26 = arith.cmpi ne, %23, %18 : vector<8x16xi32>
    %27 = arith.andi %25, %26 : vector<8x16xi1>
    %cst_11 = arith.constant 2.000000e+01 : f32
    %28 = vector.broadcast %cst_11 : f32 to vector<8x1xf32>
    %29 = arith.subf %6, %28 : vector<8x1xf32>
    %30 = math.exp %29 : vector<8x1xf32>
    %cst_12 = arith.constant 2.000000e+01 : f32
    %31 = vector.broadcast %cst_12 : f32 to vector<8x16xf32>
    %32 = arith.subf %12, %31 : vector<8x16xf32>
    %33 = math.exp %32 : vector<8x16xf32>
    %cst_13 = arith.constant 0.000000e+00 : f32
    %34 = vector.broadcast %cst_13 : f32 to vector<8x16xf32>
    %35 = arith.select %27, %33, %34 : vector<8x16xi1>, vector<8x16xf32>
    %cst_14 = arith.constant dense<0.000000e+00> : vector<8xf32>
    %36 = vector.multi_reduction <add>, %35, %cst_14 [1] : vector<8x16xf32> to vector<8xf32>
    %37 = vector.shape_cast %36 : vector<8xf32> to vector<8x1xf32>
    %38 = arith.addf %30, %37 : vector<8x1xf32>
    %cst_15 = arith.constant 2.000000e+01 : f32
    %39 = vector.broadcast %cst_15 : f32 to vector<8x16xf32>
    %40 = arith.subf %13, %39 : vector<8x16xf32>
    %41 = math.exp %40 : vector<8x16xf32>
    %cst_16 = arith.constant 0.000000e+00 : f32
    %42 = vector.broadcast %cst_16 : f32 to vector<8x16xf32>
    %43 = arith.select %27, %41, %42 : vector<8x16xi1>, vector<8x16xf32>
    %cst_17 = arith.constant dense<0.000000e+00> : vector<8xf32>
    %44 = vector.multi_reduction <add>, %43, %cst_17 [1] : vector<8x16xf32> to vector<8xf32>
    %45 = vector.shape_cast %44 : vector<8xf32> to vector<8x1xf32>
    %46 = arith.addf %30, %45 : vector<8x1xf32>
    %47 = arith.divf %30, %38 : vector<8x1xf32>
    %cst_18 = arith.constant 1.17549435E-38 : f32
    %48 = vector.broadcast %cst_18 : f32 to vector<8x1xf32>
    %49 = arith.addf %47, %48 : vector<8x1xf32>
    %50 = math.log %49 : vector<8x1xf32>
    %51 = arith.divf %30, %46 : vector<8x1xf32>
    %cst_19 = arith.constant 1.17549435E-38 : f32
    %52 = vector.broadcast %cst_19 : f32 to vector<8x1xf32>
    %53 = arith.addf %51, %52 : vector<8x1xf32>
    %54 = math.log %53 : vector<8x1xf32>
    %55 = arith.addf %50, %54 : vector<8x1xf32>
    %cst_20 = arith.constant 0.000000e+00 : f32
    %56 = vector.broadcast %cst_20 : f32 to vector<8x1xf32>
    %57 = arith.subf %56, %55 : vector<8x1xf32>
    %58 = tpu.iota {dimensions = array<i32: 0>} : vector<8x1xi32>
    %c8_i32_21 = arith.constant 8 : i32
    %59 = arith.muli %arg0, %c8_i32_21 : i32
    %60 = vector.broadcast %59 : i32 to vector<8x1xi32>
    %61 = arith.addi %58, %60 : vector<8x1xi32>
    %c8_i32_22 = arith.constant 8 : i32
    %62 = vector.broadcast %c8_i32_22 : i32 to vector<8x1xi32>
    %63 = arith.cmpi slt, %61, %62 : vector<8x1xi32>
    %cst_23 = arith.constant 0.000000e+00 : f32
    %64 = vector.broadcast %cst_23 : f32 to vector<8x1xf32>
    %65 = arith.select %63, %57, %64 : vector<8x1xi1>, vector<8x1xf32>
    %cst_24 = arith.constant dense<0.000000e+00> : vector<1xf32>
    %66 = vector.multi_reduction <add>, %65, %cst_24 [0] : vector<8x1xf32> to vector<1xf32>
    %67 = vector.shape_cast %66 : vector<1xf32> to vector<1x1xf32>
    %68 = vector.shape_cast %67 : vector<1x1xf32> to vector<1x1xf32>
    %69 = vector.broadcast %68 : vector<1x1xf32> to vector<8x128xf32>
    %c0_25 = arith.constant 0 : index
    %c0_26 = arith.constant 0 : index
    %70 = vector.load %arg4[%c0_25, %c0_26] : memref<8x128xf32, #tpu.memory_space<vmem>>, vector<8x128xf32>
    tpu.vector_store %arg4[%c0_25, %c0_26], %69 {strides = array<i32>} : memref<8x128xf32, #tpu.memory_space<vmem>>, vector<8x128xf32>,
    return
  }
  func.func @transform_0(%arg0: i32) -> (i32, i32) {
    %c0_i32 = arith.constant 0 : i32
    %c0_i32_0 = arith.constant 0 : i32
    return %arg0, %c0_i32 : i32, i32
  }
  func.func @transform_1(%arg0: i32) -> (i32, i32) {
    %c0_i32 = arith.constant 0 : i32
    %c0_i32_0 = arith.constant 0 : i32
    return %arg0, %c0_i32 : i32, i32
  }
  func.func @transform_2(%arg0: i32) -> (i32, i32) {
    %c0_i32 = arith.constant 0 : i32
    %c0_i32_0 = arith.constant 0 : i32
    %c0_i32_1 = arith.constant 0 : i32
    return %c0_i32, %c0_i32_0 : i32, i32
  }
  func.func @transform_3(%arg0: i32) -> (i32, i32) {
    %c0_i32 = arith.constant 0 : i32
    %c0_i32_0 = arith.constant 0 : i32
    return %arg0, %c0_i32 : i32, i32
  }
}

module attributes {stable_mosaic.version = 11 : i64} {
  func.func @_infonce_pairs_kernel(%arg0: i32, %arg1: memref<8x32xf32, #tpu.memory_space<vmem>>, %arg2: memref<8x32xf32, #tpu.memory_space<vmem>>, %arg3: memref<16x32xf32, #tpu.memory_space<vmem>>, %arg4: memref<8x128xf32, #tpu.memory_space<vmem>>) attributes {dimension_semantics = [#tpu.dimension_semantics<parallel>], iteration_bounds = array<i64: 1>, scalar_prefetch = 0 : i64, scratch_operands = 0 : i64, tpu.core_type = #tpu.core_type<tc>, window_params = [{transform_indices = @transform_0, window_bounds = array<i64: 8, 32>}, {transform_indices = @transform_1, window_bounds = array<i64: 8, 32>}, {pipeline_mode = #tpu.pipeline_mode<synchronous>, transform_indices = @transform_2, window_bounds = array<i64: 16, 32>}, {transform_indices = @transform_3, window_bounds = array<i64: 8, 128>}]} {
    %c0 = arith.constant 0 : index
    %c0_0 = arith.constant 0 : index
    %0 = vector.load %arg1[%c0, %c0_0] : memref<8x32xf32, #tpu.memory_space<vmem>>, vector<8x32xf32>
    %c0_1 = arith.constant 0 : index
    %c0_2 = arith.constant 0 : index
    %1 = vector.load %arg2[%c0_1, %c0_2] : memref<8x32xf32, #tpu.memory_space<vmem>>, vector<8x32xf32>
    %2 = arith.mulf %0, %1 : vector<8x32xf32>
    %cst = arith.constant dense<0.000000e+00> : vector<8xf32>
    %3 = vector.multi_reduction <add>, %2, %cst [1] : vector<8x32xf32> to vector<8xf32>
    %4 = vector.shape_cast %3 : vector<8xf32> to vector<8x1xf32>
    %cst_3 = arith.constant 2.000000e+01 : f32
    %5 = vector.broadcast %cst_3 : f32 to vector<8x1xf32>
    %6 = arith.mulf %4, %5 : vector<8x1xf32>
    %7 = tpu.concatenate %0, %1 in 0 : vector<8x32xf32>, vector<8x32xf32> -> vector<16x32xf32>
    %cst_4 = arith.constant 2.000000e+01 : f32
    %8 = vector.broadcast %cst_4 : f32 to vector<16x32xf32>
    %9 = arith.mulf %7, %8 : vector<16x32xf32>
    %c0_5 = arith.constant 0 : index
    %c0_6 = arith.constant 0 : index
    %10 = vector.load %arg3[%c0_5, %c0_6] : memref<16x32xf32, #tpu.memory_space<vmem>>, vector<16x32xf32>
    %cst_7 = arith.constant dense<0.000000e+00> : vector<16x16xf32>
    %11 = tpu.matmul %9, %10, %cst_7 {dimension_numbers = #tpu.dot_dimension_numbers<[1], [1], [0], [0], [0, 0, 1, 0], [], []>} : vector<16x32xf32>, vector<16x32xf32>, vector<16x16xf32> -> vector<16x16xf32>
    %12 = vector.extract_strided_slice %11 {offsets = [0, 0], sizes = [8, 16], strides = [1, 1]} : vector<16x16xf32> to vector<8x16xf32>
    %13 = vector.extract_strided_slice %11 {offsets = [8, 0], sizes = [8, 16], strides = [1, 1]} : vector<16x16xf32> to vector<8x16xf32>
    %14 = tpu.iota {dimensions = array<i32: 1>} : vector<8x16xi32>
    %15 = tpu.iota {dimensions = array<i32: 0>} : vector<8x16xi32>
    %c8_i32 = arith.constant 8 : i32
    %16 = arith.muli %arg0, %c8_i32 : i32
    %17 = vector.broadcast %16 : i32 to vector<8x16xi32>
    %18 = arith.addi %15, %17 : vector<8x16xi32>
    %c8_i32_8 = arith.constant 8 : i32
    %19 = vector.broadcast %c8_i32_8 : i32 to vector<8x16xi32>
    %20 = arith.cmpi sge, %14, %19 : vector<8x16xi32>
    %c8_i32_9 = arith.constant 8 : i32
    %21 = vector.broadcast %c8_i32_9 : i32 to vector<8x16xi32>
    %22 = arith.subi %14, %21 : vector<8x16xi32>
    %23 = arith.select %20, %22, %14 : vector<8x16xi1>, vector<8x16xi32>
    %c8_i32_10 = arith.constant 8 : i32
    %24 = vector.broadcast %c8_i32_10 : i32 to vector<8x16xi32>
    %25 = arith.cmpi slt, %23, %24 : vector<8x16xi32>
    %26 = arith.cmpi ne, %23, %18 : vector<8x16xi32>
    %27 = arith.andi %25, %26 : vector<8x16xi1>
    %cst_11 = arith.constant 2.000000e+01 : f32
    %28 = vector.broadcast %cst_11 : f32 to vector<8x1xf32>
    %29 = arith.subf %6, %28 : vector<8x1xf32>
    %30 = math.exp %29 : vector<8x1xf32>
    %cst_12 = arith.constant 2.000000e+01 : f32
    %31 = vector.broadcast %cst_12 : f32 to vector<8x16xf32>
    %32 = arith.subf %12, %31 : vector<8x16xf32>
    %33 = math.exp %32 : vector<8x16xf32>
    %cst_13 = arith.constant 0.000000e+00 : f32
    %34 = vector.broadcast %cst_13 : f32 to vector<8x16xf32>
    %35 = arith.select %27, %33, %34 : vector<8x16xi1>, vector<8x16xf32>
    %cst_14 = arith.constant dense<0.000000e+00> : vector<8xf32>
    %36 = vector.multi_reduction <add>, %35, %cst_14 [1] : vector<8x16xf32> to vector<8xf32>
    %37 = vector.shape_cast %36 : vector<8xf32> to vector<8x1xf32>
    %38 = arith.addf %30, %37 : vector<8x1xf32>
    %cst_15 = arith.constant 2.000000e+01 : f32
    %39 = vector.broadcast %cst_15 : f32 to vector<8x16xf32>
    %40 = arith.subf %13, %39 : vector<8x16xf32>
    %41 = math.exp %40 : vector<8x16xf32>
    %cst_16 = arith.constant 0.000000e+00 : f32
    %42 = vector.broadcast %cst_16 : f32 to vector<8x16xf32>
    %43 = arith.select %27, %41, %42 : vector<8x16xi1>, vector<8x16xf32>
    %cst_17 = arith.constant dense<0.000000e+00> : vector<8xf32>
    %44 = vector.multi_reduction <add>, %43, %cst_17 [1] : vector<8x16xf32> to vector<8xf32>
    %45 = vector.shape_cast %44 : vector<8xf32> to vector<8x1xf32>
    %46 = arith.addf %30, %45 : vector<8x1xf32>
    %47 = arith.divf %30, %38 : vector<8x1xf32>
    %cst_18 = arith.constant 1.17549435E-38 : f32
    %48 = vector.broadcast %cst_18 : f32 to vector<8x1xf32>
    %49 = arith.addf %47, %48 : vector<8x1xf32>
    %50 = math.log %49 : vector<8x1xf32>
    %51 = arith.divf %30, %46 : vector<8x1xf32>
    %cst_19 = arith.constant 1.17549435E-38 : f32
    %52 = vector.broadcast %cst_19 : f32 to vector<8x1xf32>
    %53 = arith.addf %51, %52 : vector<8x1xf32>
    %54 = math.log %53 : vector<8x1xf32>
    %55 = arith.addf %50, %54 : vector<8x1xf32>
    %cst_20 = arith.constant 0.000000e+00 : f32
    %56 = vector.broadcast %cst_20 : f32 to vector<8x1xf32>
    %57 = arith.subf %56, %55 : vector<8x1xf32>
    %58 = tpu.iota {dimensions = array<i32: 0>} : vector<8x1xi32>
    %c8_i32_21 = arith.constant 8 : i32
    %59 = arith.muli %arg0, %c8_i32_21 : i32
    %60 = vector.broadcast %59 : i32 to vector<8x1xi32>
    %61 = arith.addi %58, %60 : vector<8x1xi32>
    %c8_i32_22 = arith.constant 8 : i32
    %62 = vector.broadcast %c8_i32_22 : i32 to vector<8x1xi32>
    %63 = arith.cmpi slt, %61, %62 : vector<8x1xi32>
    %cst_23 = arith.constant 0.000000e+00 : f32
    %64 = vector.broadcast %cst_23 : f32 to vector<8x1xf32>
    %65 = arith.select %63, %57, %64 : vector<8x1xi1>, vector<8x1xf32>
    %cst_24 = arith.constant dense<0.000000e+00> : vector<1xf32>
    %66 = vector.multi_reduction <add>, %65, %cst_24 [0] : vector<8x1xf32> to vector<1xf32>
    %67 = vector.shape_cast %66 : vector<1xf32> to vector<1x1xf32>
    %68 = vector.shape_cast %67 : vector<1x1xf32> to vector<1x1xf32>
    %69 = vector.broadcast %68 : vector<1x1xf32> to vector<8x128xf32>
    %c0_25 = arith.constant 0 : index
    %c0_26 = arith.constant 0 : index
    %70 = vector.load %arg4[%c0_25, %c0_26] : memref<8x128xf32, #tpu.memory_space<vmem>>, vector<8x128xf32>
    tpu.vector_store %arg4[%c0_25, %c0_26], %69 {strides = array<i32>} : memref<8x128xf32, #tpu.memory_space<vmem>>, vector<8x128xf32>,
    return
  }
  func.func @transform_0(%arg0: i32) -> (i32, i32) {
    %c0_i32 = arith.constant 0 : i32
    %c0_i32_0 = arith.constant 0 : i32
    return %arg0, %c0_i32 : i32, i32
  }
  func.func @transform_1(%arg0: i32) -> (i32, i32) {
    %c0_i32 = arith.constant 0 : i32
    %c0_i32_0 = arith.constant 0 : i32
    return %arg0, %c0_i32 : i32, i32
  }
  func.func @transform_2(%arg0: i32) -> (i32, i32) {
    %c0_i32 = arith.constant 0 : i32
    %c0_i32_0 = arith.constant 0 : i32
    %c0_i32_1 = arith.constant 0 : i32
    return %c0_i32, %c0_i32_0 : i32, i32
  }
  func.func @transform_3(%arg0: i32) -> (i32, i32) {
    %c0_i32 = arith.constant 0 : i32
    %c0_i32_0 = arith.constant 0 : i32
    return %arg0, %c0_i32 : i32, i32
  }
}

</mosaic_0001>

<llo_original>
// kernel: tpu_custom_call.1
$region0: #{tpu_custom_call.1}
  #allocation0 [shape = 'u32[]', space=smem, size = 0x4, offset = 0x4, fixed_abs, tag = 'smem constant byte address 0x4 - core index']
  #allocation1 [shape = 'u32[144,128]{1,0:T(1,128)}', space=vmem, size = 0x12000, scoped, tag = 'internal scratch']
  %s0 = inlined_call_operand.hbm [shape: f32[8,32], index: 0, kind: input, shape index: {}]
  %s1 = inlined_call_operand.hbm [shape: f32[8,32], index: 1, kind: input, shape index: {}]
  %s2 = inlined_call_operand.hbm [shape: f32[16,32], index: 2, kind: input, shape index: {}]
  %s3 = inlined_call_operand.hbm [shape: f32[8,128], index: 3, kind: output, shape index: {}]
  %s4 = sld [smem:[#allocation0]]
  $region34: #{tpu_custom_call.1} parent=0
    _
  %s6 = ssub.s32 1, %s4
  %s7 = scalar_select 0, %s6, %s4
  $region1: #{tpu_custom_call.1} parent=0
    #allocation2 [shape = 'u8[4096]{0}', space=vmem, size = 0x1000, scoped, tag = 'input window, operand 0, single buffered']
    #allocation3 [shape = 's32[1]{0}', space=sflag, size = 0x4, scoped, tag = 'scoped memory for tpu_custom_call.1']
    #allocation4 [shape = 's32[1]{0}', space=sflag, size = 0x4, scoped, tag = 'scoped memory for tpu_custom_call.1']
    #allocation5 [shape = 'u8[4096]{0}', space=vmem, size = 0x1000, scoped, tag = 'input window, operand 1, single buffered']
    #allocation6 [shape = 's32[1]{0}', space=sflag, size = 0x4, scoped, tag = 'scoped memory for tpu_custom_call.1']
    #allocation7 [shape = 'u8[8192]{0}', space=vmem, size = 0x2000, scoped, tag = 'input window, operand 2, single buffered']
    #allocation8 [shape = 'u8[4096]{0}', space=vmem, size = 0x1000, scoped, tag = 'output window, operand 0, single buffered']
    %8 = vsyncpa [#allocation3], 0
    %9 = vsyncpa [#allocation6], 0
    %10 = vsyncpa [#allocation4], 0
    // Predicated region
    $region2: #{tpu_custom_call.1} parent=1 // pred_check
      _
    $region3: #{tpu_custom_call.1} parent=1 // pred_check_branch
      %12 = sbr.rel (0) target = $region5
    $region4: #{tpu_custom_call.1} parent=1 // pred_region
      %s14 = ssub.s32 128, 128
      %15 = vsyncadd [#allocation3], %s14
      %s17 = sshll.u32 [#allocation2], 4
      %s18 = int_to_ptr.vmem [resolvable:$true] %s17
      %20 = dma.hbm_to_vmem [thread:$0]  %s0, 128, %s18, [#allocation3]
    $region5: #{tpu_custom_call.1} parent=1 // pred_fallthru
      _
    // Predicated region
    $region6: #{tpu_custom_call.1} parent=1 // pred_check
      _
    $region7: #{tpu_custom_call.1} parent=1 // pred_check_branch
      %22 = sbr.rel (0) target = $region9
    $region8: #{tpu_custom_call.1} parent=1 // pred_region
      %s24 = ssub.s32 128, 128
      %25 = vsyncadd [#allocation6], %s24
      %s27 = sshll.u32 [#allocation5], 4
      %s28 = int_to_ptr.vmem [resolvable:$true] %s27
      %30 = dma.hbm_to_vmem [thread:$0]  %s1, 128, %s28, [#allocation6]
    $region9: #{tpu_custom_call.1} parent=1 // pred_fallthru
      _
    // Predicated region
    $region10: #{tpu_custom_call.1} parent=1 // pred_check
      _
    $region11: #{tpu_custom_call.1} parent=1 // pred_check_branch
      %32 = sbr.rel (0) target = $region13
    $region12: #{tpu_custom_call.1} parent=1 // pred_region
      %s34 = ssub.s32 256, 256
      %35 = vsyncadd [#allocation6], %s34
      %s36 = sshll.u32 [#allocation7], 4
      %s37 = int_to_ptr.vmem [resolvable:$true] %s36
      %42 = dma.hbm_to_vmem [thread:$0]  %s2, 256, %s37, [#allocation6], 128, 128, 8
    $region13: #{tpu_custom_call.1} parent=1 // pred_fallthru
      _
    // Predicated region
    $region14: #{tpu_custom_call.1} parent=1 // pred_check
      _
    $region15: #{tpu_custom_call.1} parent=1 // pred_check_branch
      %44 = sbr.rel (0) target = $region17
    $region16: #{tpu_custom_call.1} parent=1 // pred_region
      %45 = dma.done [#allocation3], 128
    $region17: #{tpu_custom_call.1} parent=1 // pred_fallthru
      _
    // Predicated region
    $region18: #{tpu_custom_call.1} parent=1 // pred_check
      _
    $region19: #{tpu_custom_call.1} parent=1 // pred_check_branch
      %47 = sbr.rel (0) target = $region21
    $region20: #{tpu_custom_call.1} parent=1 // pred_region
      %48 = dma.done [#allocation6], 128
    $region21: #{tpu_custom_call.1} parent=1 // pred_fallthru
      _
    // Predicated region
    $region22: #{tpu_custom_call.1} parent=1 // pred_check
      _
    $region23: #{tpu_custom_call.1} parent=1 // pred_check_branch
      %50 = sbr.rel (0) target = $region25
    $region24: #{tpu_custom_call.1} parent=1 // pred_region
      %51 = dma.done [#allocation6], 256
    $region25: #{tpu_custom_call.1} parent=1 // pred_fallthru
      _
    %v52 = vld [vmem:[#allocation2] sm:$0xff]
    %v53 = vld [vmem:[#allocation5] sm:$0xff]
    %v54 = vmul.f32 %v52, %v53
    %vm55 = vcmask 261120
    %v56 = vsel %vm55, %v54, 0.0
    %57 = vadd.xlane.f32.xlu0 %v56
    %v58 = vpop.xlane.xlu0 %57
    %v59 = vmul.f32 %v58, 20.0
    %v60 = vmul.f32 %v52, 20.0
    %v61 = vmul.f32 %v53, 20.0
    %v62 = vld [vmem:[#allocation7] sm:$0xff]
    %v63 = vld [vmem:[#allocation7 + $0x8] sm:$0xff]
    %v65 = vsel %vm55, %v60, 0
    %v68 = vsel %vm55, %v61, 0
    %v71 = vsel %vm55, %v62, 0
    %v74 = vsel %vm55, %v63, 0
    %76 = vmatprep.subr.mxu0 0.0
    %77 = vmatpush1.xpose.msra.mxu0 %v71
    %78 = vmatprep.subr.mxu0 0.0
    %79 = vmatpush1.xpose.msra.mxu0 %v74
    %80 = vmatprep.subr.mxu0 0.0
    %81 = vmatpush1.xpose.msra.mxu0 0.0
    %82 = vmatprep.subr.mxu0 0.0
    %83 = vmatpush1.xpose.msra.mxu0 0.0
    %84 = vmatprep.subr.mxu0 0.0
    %85 = vmatpush1.xpose.msra.mxu0 0.0
    %86 = vmatprep.subr.mxu0 0.0
    %87 = vmatpush1.xpose.msra.mxu0 0.0
    %88 = vmatprep.subr.mxu0 0.0
    %89 = vmatpush1.xpose.msra.mxu0 0.0
    %90 = vmatprep.subr.mxu0 0.0
    %91 = vmatpush1.xpose.msra.mxu0 0.0
    %92 = vmatprep.subr.mxu0 0.0
    %93 = vmatpush1.xpose.msra.mxu0 0.0
    %94 = vmatprep.subr.mxu0 0.0
    %95 = vmatpush1.xpose.msra.mxu0 0.0
    %96 = vmatprep.subr.mxu0 0.0
    %97 = vmatpush1.xpose.msra.mxu0 0.0
    %98 = vmatprep.subr.mxu0 0.0
    %99 = vmatpush1.xpose.msra.mxu0 0.0
    %100 = vmatprep.subr.mxu0 0.0
    %101 = vmatpush1.xpose.msra.mxu0 0.0
    %102 = vmatprep.subr.mxu0 0.0
    %103 = vmatpush1.xpose.msra.mxu0 0.0
    %104 = vmatprep.subr.mxu0 0.0
    %105 = vmatpush1.xpose.msra.mxu0 0.0
    %106 = vmatprep.subr.mxu0 0.0
    %107 = vmatpush1.xpose.msra.mxu0 0.0
    %108 = vmatprep.subr.mxu0 0.0
    %109 = vmatpush1.xpose.msra.mxu0 0.0
    %110 = vmatprep.subr.mxu0 0.0
    %111 = vmatpush1.xpose.msra.mxu0 0.0
    %112 = vmatprep.subr.mxu0 0.0
    %113 = vmatpush1.xpose.msra.mxu0 0.0
    %114 = vmatprep.subr.mxu0 0.0
    %115 = vmatpush1.xpose.msra.mxu0 0.0
    %116 = vmatprep.subr.mxu0 0.0
    %117 = vmatpush1.xpose.msra.mxu0 0.0
    %118 = vmatprep.subr.mxu0 0.0
    %119 = vmatpush1.xpose.msra.mxu0 0.0
    %120 = vmatprep.subr.mxu0 0.0
    %121 = vmatpush1.xpose.msra.mxu0 0.0
    %122 = vmatprep.subr.mxu0 0.0
    %123 = vmatpush1.xpose.msra.mxu0 0.0
    %124 = vmatprep.subr.mxu0 0.0
    %125 = vmatpush1.xpose.msra.mxu0 0.0
    %126 = vmatprep.subr.mxu0 0.0
    %127 = vmatpush1.xpose.msra.mxu0 0.0
    %128 = vmatprep.subr.mxu0 0.0
    %129 = vmatpush1.xpose.msra.mxu0 0.0
    %130 = vmatprep.subr.mxu0 0.0
    %131 = vmatpush1.xpose.msra.mxu0 0.0
    %132 = vmatprep.subr.mxu0 0.0
    %133 = vmatpush1.xpose.msra.mxu0 0.0
    %134 = vmatprep.subr.mxu0 0.0
    %135 = vmatpush1.xpose.msra.mxu0 0.0
    %136 = vmatprep.subr.mxu0 0.0
    %137 = vmatpush1.xpose.msra.mxu0 0.0
    %138 = vmatprep.subr.mxu0 0.0
    %139 = vmatpush1.xpose.msra.mxu0 0.0
    %140 = vmatprep.mubr.f32.mxu0 0.0
    %141 = vmatmul.mubr.f32.gmra.mrb[0].mxu0 %v65
    %v142 = vpop.f32.mrb[0].mxu0
    %v143 = vadd.f32 0.0, %v142
    %v144 = vpop.f32.mrb[0].mxu0
    %145 = vmatprep.mubr.f32.mxu0 0.0
    %146 = vmatmul.mubr.f32.gmra.mrb[0].mxu0 %v68
    %v147 = vpop.f32.mrb[0].mxu0
    %v148 = vadd.f32 0.0, %v147
    %v149 = vpop.f32.mrb[0].mxu0
    %150 = vdwg.mxu0
    %v151 = vlaneseq
    %v152 = vand.u32 %v151, 127
    %v153 = vlaneseq
    %v154 = vshrl.u32 %v153, 7
    %s155 = smul.u32 0, 8
    %v156 = vstv %s155
    %v157 = vadd.s32 %v154, %v156
    %vm158 = vcmp.ge.s32.totalorder %v152, 8
    %v159 = vsub.s32 %v152, 8
    %v160 = vsel %vm158, %v159, %v152
    %vm161 = vcmp.lt.s32.totalorder %v160, 8
    %vm162 = vcmp.ne.s32.totalorder %v160, %v157
    %vm163 = vmand %vm161, %vm162
    %v164 = vsub.f32 %v59, 20.0
    %v165 = vmul.f32 %v164, 1.442695
    %v166 = vpow.pop %v165
    %v167 = vsub.f32 %v143, 20.0
    %v168 = vmul.f32 %v167, 1.442695
    %v169 = vpow.pop %v168
    %v170 = vsel %vm163, %v169, 0.0
    %vm171 = vcmask 130048
    %v172 = vsel %vm171, %v170, 0.0
    %173 = vadd.xlane.f32.xlu0 %v172
    %v174 = vpop.xlane.xlu0 %173
    %v175 = vadd.f32 %v166, %v174
    %v176 = vsub.f32 %v148, 20.0
    %v177 = vmul.f32 %v176, 1.442695
    %v178 = vpow.pop %v177
    %v179 = vsel %vm163, %v178, 0.0
    %v180 = vsel %vm171, %v179, 0.0
    %181 = vadd.xlane.f32.xlu0 %v180
    %v182 = vpop.xlane.xlu0 %181
    %v183 = vadd.f32 %v166, %v182
    %v184 = vrcp.pop %v175
    %v185 = vmul.f32 %v166, %v184
    %v186 = vadd.f32 %v185, 1.1754944e-38
    %v187 = vlog2.pop %v186
    %v188 = vmul.f32 %v187, 0.6931472
    %v189 = vrcp.pop %v183
    %v190 = vmul.f32 %v166, %v189
    %v191 = vadd.f32 %v190, 1.1754944e-38
    %v192 = vlog2.pop %v191
    %v193 = vmul.f32 %v192, 0.6931472
    %v194 = vadd.f32 %v188, %v193
    %v195 = vsub.f32 0.0, %v194
    %vm196 = vcmp.lt.s32.totalorder %v157, 8
    %v197 = vsel %vm196, %v195, 0.0
    %v198 = vrot.slane %v197, 4
    %v199 = vadd.f32 %v197, %v198
    %v200 = vrot.slane %v199, 2
    %v201 = vadd.f32 %v199, %v200
    %v202 = vrot.slane %v201, 1
    %v203 = vadd.f32 %v201, %v202
    %204 = vst [vmem:[#allocation8] sm:$0xff] %v203
    // Predicated region
    $region26: #{tpu_custom_call.1} parent=1 // pred_check
      _
    $region27: #{tpu_custom_call.1} parent=1 // pred_check_branch
      %206 = sbr.rel (0) target = $region29
    $region28: #{tpu_custom_call.1} parent=1 // pred_region
      %s208 = ssub.s32 128, 128
      %209 = vsyncadd [#allocation4], %s208
      %s211 = sshll.u32 [#allocation8], 4
      %s212 = int_to_ptr.vmem [resolvable:$true] %s211
      %214 = dma.vmem_to_hbm [thread:$0]  %s212, 128, %s3, [#allocation4]
    $region29: #{tpu_custom_call.1} parent=1 // pred_fallthru
      _
    // Predicated region
    $region30: #{tpu_custom_call.1} parent=1 // pred_check
      _
    $region31: #{tpu_custom_call.1} parent=1 // pred_check_branch
      %216 = sbr.rel (0) target = $region33
    $region32: #{tpu_custom_call.1} parent=1 // pred_region
      %217 = dma.done [#allocation4], 128
    $region33: #{tpu_custom_call.1} parent=1 // pred_fallthru
      _
    %218 = vsyncpa [#allocation3], 1
    %219 = vsyncpa [#allocation6], 1
    %220 = vsyncpa [#allocation4], 1

// kernel: tpu_custom_call.1
$region0: #{tpu_custom_call.1}
  #allocation0 [shape = 'u32[]', space=smem, size = 0x4, offset = 0x4, fixed_abs, tag = 'smem constant byte address 0x4 - core index']
  #allocation1 [shape = 'u32[144,128]{1,0:T(1,128)}', space=vmem, size = 0x12000, scoped, tag = 'internal scratch']
  %s0 = inlined_call_operand.hbm [shape: f32[8,32], index: 0, kind: input, shape index: {}]
  %s1 = inlined_call_operand.hbm [shape: f32[8,32], index: 1, kind: input, shape index: {}]
  %s2 = inlined_call_operand.hbm [shape: f32[16,32], index: 2, kind: input, shape index: {}]
  %s3 = inlined_call_operand.hbm [shape: f32[8,128], index: 3, kind: output, shape index: {}]
  %s4 = sld [smem:[#allocation0]]
  $region34: #{tpu_custom_call.1} parent=0
    _
  %s6 = ssub.s32 1, %s4
  %s7 = scalar_select 0, %s6, %s4
  $region1: #{tpu_custom_call.1} parent=0
    #allocation2 [shape = 'u8[4096]{0}', space=vmem, size = 0x1000, scoped, tag = 'input window, operand 0, single buffered']
    #allocation3 [shape = 's32[1]{0}', space=sflag, size = 0x4, scoped, tag = 'scoped memory for tpu_custom_call.1']
    #allocation4 [shape = 's32[1]{0}', space=sflag, size = 0x4, scoped, tag = 'scoped memory for tpu_custom_call.1']
    #allocation5 [shape = 'u8[4096]{0}', space=vmem, size = 0x1000, scoped, tag = 'input window, operand 1, single buffered']
    #allocation6 [shape = 's32[1]{0}', space=sflag, size = 0x4, scoped, tag = 'scoped memory for tpu_custom_call.1']
    #allocation7 [shape = 'u8[8192]{0}', space=vmem, size = 0x2000, scoped, tag = 'input window, operand 2, single buffered']
    #allocation8 [shape = 'u8[4096]{0}', space=vmem, size = 0x1000, scoped, tag = 'output window, operand 0, single buffered']
    %8 = vsyncpa [#allocation3], 0
    %9 = vsyncpa [#allocation6], 0
    %10 = vsyncpa [#allocation4], 0
    // Predicated region
    $region2: #{tpu_custom_call.1} parent=1 // pred_check
      _
    $region3: #{tpu_custom_call.1} parent=1 // pred_check_branch
      %12 = sbr.rel (0) target = $region5
    $region4: #{tpu_custom_call.1} parent=1 // pred_region
      %s14 = ssub.s32 128, 128
      %15 = vsyncadd [#allocation3], %s14
      %s17 = sshll.u32 [#allocation2], 4
      %s18 = int_to_ptr.vmem [resolvable:$true] %s17
      %20 = dma.hbm_to_vmem [thread:$0]  %s0, 128, %s18, [#allocation3]
    $region5: #{tpu_custom_call.1} parent=1 // pred_fallthru
      _
    // Predicated region
    $region6: #{tpu_custom_call.1} parent=1 // pred_check
      _
    $region7: #{tpu_custom_call.1} parent=1 // pred_check_branch
      %22 = sbr.rel (0) target = $region9
    $region8: #{tpu_custom_call.1} parent=1 // pred_region
      %s24 = ssub.s32 128, 128
      %25 = vsyncadd [#allocation6], %s24
      %s27 = sshll.u32 [#allocation5], 4
      %s28 = int_to_ptr.vmem [resolvable:$true] %s27
      %30 = dma.hbm_to_vmem [thread:$0]  %s1, 128, %s28, [#allocation6]
    $region9: #{tpu_custom_call.1} parent=1 // pred_fallthru
      _
    // Predicated region
    $region10: #{tpu_custom_call.1} parent=1 // pred_check
      _
    $region11: #{tpu_custom_call.1} parent=1 // pred_check_branch
      %32 = sbr.rel (0) target = $region13
    $region12: #{tpu_custom_call.1} parent=1 // pred_region
      %s34 = ssub.s32 256, 256
      %35 = vsyncadd [#allocation6], %s34
      %s36 = sshll.u32 [#allocation7], 4
      %s37 = int_to_ptr.vmem [resolvable:$true] %s36
      %42 = dma.hbm_to_vmem [thread:$0]  %s2, 256, %s37, [#allocation6], 128, 128, 8
    $region13: #{tpu_custom_call.1} parent=1 // pred_fallthru
      _
    // Predicated region
    $region14: #{tpu_custom_call.1} parent=1 // pred_check
      _
    $region15: #{tpu_custom_call.1} parent=1 // pred_check_branch
      %44 = sbr.rel (0) target = $region17
    $region16: #{tpu_custom_call.1} parent=1 // pred_region
      %45 = dma.done [#allocation3], 128
    $region17: #{tpu_custom_call.1} parent=1 // pred_fallthru
      _
    // Predicated region
    $region18: #{tpu_custom_call.1} parent=1 // pred_check
      _
    $region19: #{tpu_custom_call.1} parent=1 // pred_check_branch
      %47 = sbr.rel (0) target = $region21
    $region20: #{tpu_custom_call.1} parent=1 // pred_region
      %48 = dma.done [#allocation6], 128
    $region21: #{tpu_custom_call.1} parent=1 // pred_fallthru
      _
    // Predicated region
    $region22: #{tpu_custom_call.1} parent=1 // pred_check
      _
    $region23: #{tpu_custom_call.1} parent=1 // pred_check_branch
      %50 = sbr.rel (0) target = $region25
    $region24: #{tpu_custom_call.1} parent=1 // pred_region
      %51 = dma.done [#allocation6], 256
    $region25: #{tpu_custom_call.1} parent=1 // pred_fallthru
      _
    %v52 = vld [vmem:[#allocation2] sm:$0xff]
    %v53 = vld [vmem:[#allocation5] sm:$0xff]
    %v54 = vmul.f32 %v52, %v53
    %vm55 = vcmask 261120
    %v56 = vsel %vm55, %v54, 0.0
    %57 = vadd.xlane.f32.xlu0 %v56
    %v58 = vpop.xlane.xlu0 %57
    %v59 = vmul.f32 %v58, 20.0
    %v60 = vmul.f32 %v52, 20.0
    %v61 = vmul.f32 %v53, 20.0
    %v62 = vld [vmem:[#allocation7] sm:$0xff]
    %v63 = vld [vmem:[#allocation7 + $0x8] sm:$0xff]
    %v65 = vsel %vm55, %v60, 0
    %v68 = vsel %vm55, %v61, 0
    %v71 = vsel %vm55, %v62, 0
    %v74 = vsel %vm55, %v63, 0
    %76 = vmatprep.subr.mxu0 0.0
    %77 = vmatpush1.xpose.msra.mxu0 %v71
    %78 = vmatprep.subr.mxu0 0.0
    %79 = vmatpush1.xpose.msra.mxu0 %v74
    %80 = vmatprep.subr.mxu0 0.0
    %81 = vmatpush1.xpose.msra.mxu0 0.0
    %82 = vmatprep.subr.mxu0 0.0
    %83 = vmatpush1.xpose.msra.mxu0 0.0
    %84 = vmatprep.subr.mxu0 0.0
    %85 = vmatpush1.xpose.msra.mxu0 0.0
    %86 = vmatprep.subr.mxu0 0.0
    %87 = vmatpush1.xpose.msra.mxu0 0.0
    %88 = vmatprep.subr.mxu0 0.0
    %89 = vmatpush1.xpose.msra.mxu0 0.0
    %90 = vmatprep.subr.mxu0 0.0
    %91 = vmatpush1.xpose.msra.mxu0 0.0
    %92 = vmatprep.subr.mxu0 0.0
    %93 = vmatpush1.xpose.msra.mxu0 0.0
    %94 = vmatprep.subr.mxu0 0.0
    %95 = vmatpush1.xpose.msra.mxu0 0.0
    %96 = vmatprep.subr.mxu0 0.0
    %97 = vmatpush1.xpose.msra.mxu0 0.0
    %98 = vmatprep.subr.mxu0 0.0
    %99 = vmatpush1.xpose.msra.mxu0 0.0
    %100 = vmatprep.subr.mxu0 0.0
    %101 = vmatpush1.xpose.msra.mxu0 0.0
    %102 = vmatprep.subr.mxu0 0.0
    %103 = vmatpush1.xpose.msra.mxu0 0.0
    %104 = vmatprep.subr.mxu0 0.0
    %105 = vmatpush1.xpose.msra.mxu0 0.0
    %106 = vmatprep.subr.mxu0 0.0
    %107 = vmatpush1.xpose.msra.mxu0 0.0
    %108 = vmatprep.subr.mxu0 0.0
    %109 = vmatpush1.xpose.msra.mxu0 0.0
    %110 = vmatprep.subr.mxu0 0.0
    %111 = vmatpush1.xpose.msra.mxu0 0.0
    %112 = vmatprep.subr.mxu0 0.0
    %113 = vmatpush1.xpose.msra.mxu0 0.0
    %114 = vmatprep.subr.mxu0 0.0
    %115 = vmatpush1.xpose.msra.mxu0 0.0
    %116 = vmatprep.subr.mxu0 0.0
    %117 = vmatpush1.xpose.msra.mxu0 0.0
    %118 = vmatprep.subr.mxu0 0.0
    %119 = vmatpush1.xpose.msra.mxu0 0.0
    %120 = vmatprep.subr.mxu0 0.0
    %121 = vmatpush1.xpose.msra.mxu0 0.0
    %122 = vmatprep.subr.mxu0 0.0
    %123 = vmatpush1.xpose.msra.mxu0 0.0
    %124 = vmatprep.subr.mxu0 0.0
    %125 = vmatpush1.xpose.msra.mxu0 0.0
    %126 = vmatprep.subr.mxu0 0.0
    %127 = vmatpush1.xpose.msra.mxu0 0.0
    %128 = vmatprep.subr.mxu0 0.0
    %129 = vmatpush1.xpose.msra.mxu0 0.0
    %130 = vmatprep.subr.mxu0 0.0
    %131 = vmatpush1.xpose.msra.mxu0 0.0
    %132 = vmatprep.subr.mxu0 0.0
    %133 = vmatpush1.xpose.msra.mxu0 0.0
    %134 = vmatprep.subr.mxu0 0.0
    %135 = vmatpush1.xpose.msra.mxu0 0.0
    %136 = vmatprep.subr.mxu0 0.0
    %137 = vmatpush1.xpose.msra.mxu0 0.0
    %138 = vmatprep.subr.mxu0 0.0
    %139 = vmatpush1.xpose.msra.mxu0 0.0
    %140 = vmatprep.mubr.f32.mxu0 0.0
    %141 = vmatmul.mubr.f32.gmra.mrb[0].mxu0 %v65
    %v142 = vpop.f32.mrb[0].mxu0
    %v143 = vadd.f32 0.0, %v142
    %v144 = vpop.f32.mrb[0].mxu0
    %145 = vmatprep.mubr.f32.mxu0 0.0
    %146 = vmatmul.mubr.f32.gmra.mrb[0].mxu0 %v68
    %v147 = vpop.f32.mrb[0].mxu0
    %v148 = vadd.f32 0.0, %v147
    %v149 = vpop.f32.mrb[0].mxu0
    %150 = vdwg.mxu0
    %v151 = vlaneseq
    %v152 = vand.u32 %v151, 127
    %v153 = vlaneseq
    %v154 = vshrl.u32 %v153, 7
    %s155 = smul.u32 0, 8
    %v156 = vstv %s155
    %v157 = vadd.s32 %v154, %v156
    %vm158 = vcmp.ge.s32.totalorder %v152, 8
    %v159 = vsub.s32 %v152, 8
    %v160 = vsel %vm158, %v159, %v152
    %vm161 = vcmp.lt.s32.totalorder %v160, 8
    %vm162 = vcmp.ne.s32.totalorder %v160, %v157
    %vm163 = vmand %vm161, %vm162
    %v164 = vsub.f32 %v59, 20.0
    %v165 = vmul.f32 %v164, 1.442695
    %v166 = vpow.pop %v165
    %v167 = vsub.f32 %v143, 20.0
    %v168 = vmul.f32 %v167, 1.442695
    %v169 = vpow.pop %v168
    %v170 = vsel %vm163, %v169, 0.0
    %vm171 = vcmask 130048
    %v172 = vsel %vm171, %v170, 0.0
    %173 = vadd.xlane.f32.xlu0 %v172
    %v174 = vpop.xlane.xlu0 %173
    %v175 = vadd.f32 %v166, %v174
    %v176 = vsub.f32 %v148, 20.0
    %v177 = vmul.f32 %v176, 1.442695
    %v178 = vpow.pop %v177
    %v179 = vsel %vm163, %v178, 0.0
    %v180 = vsel %vm171, %v179, 0.0
    %181 = vadd.xlane.f32.xlu0 %v180
    %v182 = vpop.xlane.xlu0 %181
    %v183 = vadd.f32 %v166, %v182
    %v184 = vrcp.pop %v175
    %v185 = vmul.f32 %v166, %v184
    %v186 = vadd.f32 %v185, 1.1754944e-38
    %v187 = vlog2.pop %v186
    %v188 = vmul.f32 %v187, 0.6931472
    %v189 = vrcp.pop %v183
    %v190 = vmul.f32 %v166, %v189
    %v191 = vadd.f32 %v190, 1.1754944e-38
    %v192 = vlog2.pop %v191
    %v193 = vmul.f32 %v192, 0.6931472
    %v194 = vadd.f32 %v188, %v193
    %v195 = vsub.f32 0.0, %v194
    %vm196 = vcmp.lt.s32.totalorder %v157, 8
    %v197 = vsel %vm196, %v195, 0.0
    %v198 = vrot.slane %v197, 4
    %v199 = vadd.f32 %v197, %v198
    %v200 = vrot.slane %v199, 2
    %v201 = vadd.f32 %v199, %v200
    %v202 = vrot.slane %v201, 1
    %v203 = vadd.f32 %v201, %v202
    %204 = vst [vmem:[#allocation8] sm:$0xff] %v203
    // Predicated region
    $region26: #{tpu_custom_call.1} parent=1 // pred_check
      _
    $region27: #{tpu_custom_call.1} parent=1 // pred_check_branch
      %206 = sbr.rel (0) target = $region29
    $region28: #{tpu_custom_call.1} parent=1 // pred_region
      %s208 = ssub.s32 128, 128
      %209 = vsyncadd [#allocation4], %s208
      %s211 = sshll.u32 [#allocation8], 4
      %s212 = int_to_ptr.vmem [resolvable:$true] %s211
      %214 = dma.vmem_to_hbm [thread:$0]  %s212, 128, %s3, [#allocation4]
    $region29: #{tpu_custom_call.1} parent=1 // pred_fallthru
      _
    // Predicated region
    $region30: #{tpu_custom_call.1} parent=1 // pred_check
      _
    $region31: #{tpu_custom_call.1} parent=1 // pred_check_branch
      %216 = sbr.rel (0) target = $region33
    $region32: #{tpu_custom_call.1} parent=1 // pred_region
      %217 = dma.done [#allocation4], 128
    $region33: #{tpu_custom_call.1} parent=1 // pred_fallthru
      _
    %218 = vsyncpa [#allocation3], 1
    %219 = vsyncpa [#allocation6], 1
    %220 = vsyncpa [#allocation4], 1

</llo_original>
